<compile_context>
chip_gen: v5e
topology: v5e:2x2
jax: 0.10.0
libtpu: 0.0.40
codegen_flags: <defaults>
</compile_context>

<pallas_src>
import functools

import jax
import jax.numpy as jnp
from jax.experimental import pallas as pl
from jax.experimental.pallas import tpu as pltpu


def _round_up(x, m):
    return ((x + m - 1) // m) * m


_MAX_TILE_T = 512  # token rows per grid step (multiple of 8)


def _lstm_tagger_kernel(ids_ref,     # VMEM (tile_t, 1) int32  token ids
                        table_ref,   # VMEM (Vp, Ep)   f32    zero-padded table
                        w_g_ref,     # VMEM (Ep, Gp)   f32    [W_i|W_g|W_o|0]
                        b_g_ref,     # VMEM (1, Gp)    f32    [b_i|b_g|b_o|0]
                        w_tag_ref,   # VMEM (H, Kp)    f32    [W_tag^T | 0]
                        b_tag_ref,   # VMEM (1, Kp)    f32    [b_tag | -1e30]
                        out_ref):    # VMEM (tile_t, Kp) f32  log-probs
    tile_t = out_ref.shape[0]
    Vp = table_ref.shape[0]
    H = w_tag_ref.shape[0]

    # ---- embedding gather as a one-hot matmul on the MXU (lane-dense).
    # Padded token rows carry id 0 (a valid row, sliced off in the wrapper);
    # padded vocab columns never match and padded table rows are zero.
    col = jax.lax.broadcasted_iota(jnp.int32, (tile_t, Vp), 1)
    onehot = (ids_ref[...] == col).astype(jnp.float32)
    emb = jnp.dot(onehot, table_ref[...], preferred_element_type=jnp.float32)

    # ---- one LSTM-cell step per token with h0 = c0 = 0:
    #      gates = x @ W_ih^T + (b_ih + b_hh)   (W_hh @ h0 vanishes)
    # Forget-gate columns were removed at prepare time (c0 == 0 -> f unused).
    gates = jnp.dot(emb, w_g_ref[...],
                    preferred_element_type=jnp.float32) + b_g_ref[...]
    i = jax.nn.sigmoid(gates[:, 0 * H:1 * H])
    g = jnp.tanh(gates[:, 1 * H:2 * H])
    o = jax.nn.sigmoid(gates[:, 2 * H:3 * H])
    h = o * jnp.tanh(i * g)                      # c = i * g

    # ---- hidden -> tag space (128-lane padded), stable log_softmax (dim=1).
    # Padded lanes carry a -1e30 bias: exp underflows to exactly 0 so they do
    # not perturb real lanes; they are sliced away by the wrapper.
    tag = jnp.dot(h, w_tag_ref[...],
                  preferred_element_type=jnp.float32) + b_tag_ref[...]
    m = jnp.max(tag, axis=1, keepdims=True)
    shifted = tag - m
    out_ref[...] = shifted - jnp.log(
        jnp.sum(jnp.exp(shifted), axis=1, keepdims=True))


def prepare_params(embedding_table, w_ih, w_hh, b_ih, b_hh, w_tag, b_tag):
    """One-time parameter preprocessing, hoisted out of the per-call path."""
    del w_hh                                     # h0 == 0 -> never used
    embedding_table = jnp.asarray(embedding_table, jnp.float32)
    w_ih = jnp.asarray(w_ih, jnp.float32)
    b_gate = jnp.asarray(b_ih, jnp.float32) + jnp.asarray(b_hh, jnp.float32)
    w_tag = jnp.asarray(w_tag, jnp.float32)
    b_tag = jnp.asarray(b_tag, jnp.float32)

    V, E = embedding_table.shape
    fourH = w_ih.shape[0]
    H = fourH // 4
    K = w_tag.shape[0]

    Vp = _round_up(V, 128)       # one-hot lane width / table sublanes
    Ep = _round_up(E, 128)       # embedding lanes (lane-dense, no extra vregs)
    Gp = _round_up(3 * H, 128)   # [i|g|o] gate lanes (forget gate dropped)
    Kp = _round_up(K, 128)       # tag lanes (lane-dense output stores)

    table_p = jnp.zeros((Vp, Ep), jnp.float32).at[:V, :E].set(embedding_table)

    w_ih_t = w_ih.T                              # (E, 4H), PyTorch order i|f|g|o
    w_igo = jnp.concatenate(
        [w_ih_t[:, 0 * H:1 * H], w_ih_t[:, 2 * H:3 * H], w_ih_t[:, 3 * H:4 * H]],
        axis=1)                                  # (E, 3H)
    b_igo = jnp.concatenate(
        [b_gate[0 * H:1 * H], b_gate[2 * H:3 * H], b_gate[3 * H:4 * H]])

    w_g_p = jnp.zeros((Ep, Gp), jnp.float32).at[:E, :3 * H].set(w_igo)
    b_g_p = jnp.zeros((1, Gp), jnp.float32).at[0, :3 * H].set(b_igo)

    w_tag_p = jnp.zeros((H, Kp), jnp.float32).at[:, :K].set(w_tag.T)
    # Finite large-negative pad (NOT -inf) so log-softmax never sees inf-inf.
    b_tag_p = jnp.full((1, Kp), -1e30, jnp.float32).at[0, :K].set(b_tag)

    return {
        "table":  table_p,    # (Vp, Ep)
        "w_gate": w_g_p,      # (Ep, Gp)
        "b_gate": b_g_p,      # (1, Gp)
        "w_tag":  w_tag_p,    # (H, Kp)
        "b_tag":  b_tag_p,    # (1, Kp)
    }


@functools.partial(jax.jit, static_argnames=("num_tags",))
def lstm_tagger_forward(sentence, params, *, num_tags):
    """Fused one-hot embedding gather + per-token LSTM cell + tag head + log_softmax."""
    table, w_g, b_g = params["table"], params["w_gate"], params["b_gate"]
    w_tag_p, b_tag_p = params["w_tag"], params["b_tag"]

    T = sentence.shape[0]
    Vp, Ep = table.shape
    Gp = w_g.shape[1]
    H, Kp = w_tag_p.shape

    # Token tiling: multiple of 8 sublanes; split roughly in half so the grid
    # is >= 2 for long sentences (v7x megacore), capped at _MAX_TILE_T so the
    # streamed (tile_t, Kp) buffers stay tiny relative to scoped VMEM.
    half = _round_up(-(-_round_up(T, 8) // 2), 8)
    tile_t = max(8, min(_MAX_TILE_T, half))
    t_pad = _round_up(T, tile_t)

    ids = jnp.zeros((t_pad, 1), jnp.int32).at[:T, 0].set(
        sentence.astype(jnp.int32))

    const = lambda shape: pl.BlockSpec(shape, lambda i: (0,) * len(shape))

    out = pl.pallas_call(
        _lstm_tagger_kernel,
        out_shape=jax.ShapeDtypeStruct((t_pad, Kp), jnp.float32),
        grid_spec=pltpu.PrefetchScalarGridSpec(
            num_scalar_prefetch=0,
            grid=(t_pad // tile_t,),
            in_specs=[
                pl.BlockSpec((tile_t, 1), lambda i: (i, 0)),   # token ids
                const((Vp, Ep)),      # embedding table (VMEM-resident)
                const((Ep, Gp)),      # fused [i|g|o] gate weight
                const((1, Gp)),       # folded gate bias
                const((H, Kp)),       # tag weight (lane-padded)
                const((1, Kp)),       # tag bias  (lane-padded with -1e30)
            ],
            out_specs=pl.BlockSpec((tile_t, Kp), lambda i: (i, 0)),
        ),
        compiler_params=pltpu.CompilerParams(
            dimension_semantics=("parallel",)),   # megacore split on v7x
    )(ids, table, w_g, b_g, w_tag_p, b_tag_p)

    return out[:T, :num_tags]


def _reference(sentence, embedding_table, w_ih, w_hh, b_ih, b_hh, w_tag, b_tag):
    """Pure-JAX reference for correctness checking (same dead-forget-gate math)."""
    del w_hh
    x = embedding_table[sentence]                  # (T, E)
    H = w_ih.shape[0] // 4
    gates = x @ w_ih.T + b_ih + b_hh
    i = jax.nn.sigmoid(gates[:, 0 * H:1 * H])
    g = jnp.tanh(gates[:, 2 * H:3 * H])
    o = jax.nn.sigmoid(gates[:, 3 * H:4 * H])
    h = o * jnp.tanh(i * g)
    tag = h @ w_tag.T + b_tag
    return jax.nn.log_softmax(tag, axis=1)


if __name__ == "__main__":
    # Small shapes consistent with the module's forward.
    EMBEDDING_DIM = 32
    HIDDEN_DIM = 32
    VOCAB_SIZE = 50
    TAGSET_SIZE = 8
    SEQ_LEN = 8

    key = jax.random.PRNGKey(0)
    k_emb, k_wih, k_whh, k_bih, k_bhh, k_wt, k_bt, k_sent = jax.random.split(key, 8)

    embedding_table = jax.random.normal(k_emb, (VOCAB_SIZE, EMBEDDING_DIM),
                                        dtype=jnp.float32)
    w_ih = 0.1 * jax.random.normal(k_wih, (4 * HIDDEN_DIM, EMBEDDING_DIM),
                                   dtype=jnp.float32)
    w_hh = 0.1 * jax.random.normal(k_whh, (4 * HIDDEN_DIM, HIDDEN_DIM),
                                   dtype=jnp.float32)
    b_ih = 0.1 * jax.random.normal(k_bih, (4 * HIDDEN_DIM,), dtype=jnp.float32)
    b_hh = 0.1 * jax.random.normal(k_bhh, (4 * HIDDEN_DIM,), dtype=jnp.float32)
    w_tag = 0.1 * jax.random.normal(k_wt, (TAGSET_SIZE, HIDDEN_DIM),
                                    dtype=jnp.float32)
    b_tag = 0.1 * jax.random.normal(k_bt, (TAGSET_SIZE,), dtype=jnp.float32)

    sentence = jax.random.randint(k_sent, (SEQ_LEN,), 0, VOCAB_SIZE,
                                  dtype=jnp.int32)

    # One-time preprocessing (transposes / bias fold / lane padding) outside
    # the hot path.
    params = prepare_params(embedding_table, w_ih, w_hh, b_ih, b_hh,
                            w_tag, b_tag)

    out = lstm_tagger_forward(sentence, params, num_tags=TAGSET_SIZE)
    out = jax.block_until_ready(out)

    ref = _reference(sentence, embedding_table,
                     w_ih, w_hh, b_ih, b_hh, w_tag, b_tag)
    assert out.shape == (SEQ_LEN, TAGSET_SIZE)
    assert jnp.allclose(out, ref, atol=1e-5, rtol=1e-5), "mismatch vs reference"

    print("KERNEL_OK")
</pallas_src>

<mosaic_0001>
module attributes {stable_mosaic.version = 11 : i64} {
  func.func @_lstm_tagger_kernel(%arg0: i32, %arg1: memref<8x1xi32, #tpu.memory_space<vmem>>, %arg2: memref<128x128xf32, #tpu.memory_space<vmem>>, %arg3: memref<128x128xf32, #tpu.memory_space<vmem>>, %arg4: memref<1x128xf32, #tpu.memory_space<vmem>>, %arg5: memref<32x128xf32, #tpu.memory_space<vmem>>, %arg6: memref<1x128xf32, #tpu.memory_space<vmem>>, %arg7: memref<8x128xf32, #tpu.memory_space<vmem>>) attributes {dimension_semantics = [#tpu.dimension_semantics<parallel>], iteration_bounds = array<i64: 1>, scalar_prefetch = 0 : i64, scratch_operands = 0 : i64, tpu.core_type = #tpu.core_type<tc>, window_params = [{transform_indices = @transform_0, window_bounds = array<i64: 8, 1>}, {pipeline_mode = #tpu.pipeline_mode<synchronous>, transform_indices = @transform_1, window_bounds = array<i64: 128, 128>}, {pipeline_mode = #tpu.pipeline_mode<synchronous>, transform_indices = @transform_2, window_bounds = array<i64: 128, 128>}, {pipeline_mode = #tpu.pipeline_mode<synchronous>, transform_indices = @transform_3, window_bounds = array<i64: 1, 128>}, {pipeline_mode = #tpu.pipeline_mode<synchronous>, transform_indices = @transform_4, window_bounds = array<i64: 32, 128>}, {pipeline_mode = #tpu.pipeline_mode<synchronous>, transform_indices = @transform_5, window_bounds = array<i64: 1, 128>}, {transform_indices = @transform_6, window_bounds = array<i64: 8, 128>}]} {
    %0 = tpu.iota {dimensions = array<i32: 1>} : vector<8x128xi32>
    %c0 = arith.constant 0 : index
    %c0_0 = arith.constant 0 : index
    %1 = vector.load %arg1[%c0, %c0_0] : memref<8x1xi32, #tpu.memory_space<vmem>>, vector<8x1xi32>
    %2 = vector.broadcast %1 : vector<8x1xi32> to vector<8x128xi32>
    %3 = arith.cmpi eq, %2, %0 : vector<8x128xi32>
    %4 = arith.extui %3 : vector<8x128xi1> to vector<8x128xi32>
    %5 = arith.sitofp %4 : vector<8x128xi32> to vector<8x128xf32>
    %c0_1 = arith.constant 0 : index
    %c0_2 = arith.constant 0 : index
    %6 = vector.load %arg2[%c0_1, %c0_2] : memref<128x128xf32, #tpu.memory_space<vmem>>, vector<128x128xf32>
    %cst = arith.constant dense<0.000000e+00> : vector<8x128xf32>
    %7 = tpu.matmul %5, %6, %cst {dimension_numbers = #tpu.dot_dimension_numbers<[1], [0], [0], [1], [0, 0, 1, 1], [], []>} : vector<8x128xf32>, vector<128x128xf32>, vector<8x128xf32> -> vector<8x128xf32>
    %c0_3 = arith.constant 0 : index
    %c0_4 = arith.constant 0 : index
    %8 = vector.load %arg3[%c0_3, %c0_4] : memref<128x128xf32, #tpu.memory_space<vmem>>, vector<128x128xf32>
    %cst_5 = arith.constant dense<0.000000e+00> : vector<8x128xf32>
    %9 = tpu.matmul %7, %8, %cst_5 {dimension_numbers = #tpu.dot_dimension_numbers<[1], [0], [0], [1], [0, 0, 1, 1], [], []>} : vector<8x128xf32>, vector<128x128xf32>, vector<8x128xf32> -> vector<8x128xf32>
    %c0_6 = arith.constant 0 : index
    %c0_7 = arith.constant 0 : index
    %10 = vector.load %arg4[%c0_6, %c0_7] : memref<1x128xf32, #tpu.memory_space<vmem>>, vector<1x128xf32>
    %11 = vector.broadcast %10 : vector<1x128xf32> to vector<8x128xf32>
    %12 = arith.addf %9, %11 : vector<8x128xf32>
    %13 = vector.extract_strided_slice %12 {offsets = [0, 0], sizes = [8, 32], strides = [1, 1]} : vector<8x128xf32> to vector<8x32xf32>
    %14 = arith.negf %13 : vector<8x32xf32>
    %15 = math.exp %14 : vector<8x32xf32>
    %cst_8 = arith.constant 1.000000e+00 : f32
    %16 = vector.broadcast %cst_8 : f32 to vector<8x32xf32>
    %17 = arith.addf %16, %15 : vector<8x32xf32>
    %18 = arith.divf %16, %17 : vector<8x32xf32>
    %19 = vector.extract_strided_slice %12 {offsets = [0, 32], sizes = [8, 32], strides = [1, 1]} : vector<8x128xf32> to vector<8x32xf32>
    %20 = math.tanh %19 : vector<8x32xf32>
    %21 = vector.extract_strided_slice %12 {offsets = [0, 64], sizes = [8, 32], strides = [1, 1]} : vector<8x128xf32> to vector<8x32xf32>
    %22 = arith.negf %21 : vector<8x32xf32>
    %23 = math.exp %22 : vector<8x32xf32>
    %cst_9 = arith.constant 1.000000e+00 : f32
    %24 = vector.broadcast %cst_9 : f32 to vector<8x32xf32>
    %25 = arith.addf %24, %23 : vector<8x32xf32>
    %26 = arith.divf %24, %25 : vector<8x32xf32>
    %27 = arith.mulf %18, %20 : vector<8x32xf32>
    %28 = math.tanh %27 : vector<8x32xf32>
    %29 = arith.mulf %26, %28 : vector<8x32xf32>
    %c0_10 = arith.constant 0 : index
    %c0_11 = arith.constant 0 : index
    %30 = vector.load %arg5[%c0_10, %c0_11] : memref<32x128xf32, #tpu.memory_space<vmem>>, vector<32x128xf32>
    %cst_12 = arith.constant dense<0.000000e+00> : vector<8x128xf32>
    %31 = tpu.matmul %29, %30, %cst_12 {dimension_numbers = #tpu.dot_dimension_numbers<[1], [0], [0], [1], [0, 0, 1, 1], [], []>} : vector<8x32xf32>, vector<32x128xf32>, vector<8x128xf32> -> vector<8x128xf32>
    %c0_13 = arith.constant 0 : index
    %c0_14 = arith.constant 0 : index
    %32 = vector.load %arg6[%c0_13, %c0_14] : memref<1x128xf32, #tpu.memory_space<vmem>>, vector<1x128xf32>
    %33 = vector.broadcast %32 : vector<1x128xf32> to vector<8x128xf32>
    %34 = arith.addf %31, %33 : vector<8x128xf32>
    %cst_15 = arith.constant dense<0xFF800000> : vector<8xf32>
    %35 = vector.multi_reduction <maximumf>, %34, %cst_15 [1] : vector<8x128xf32> to vector<8xf32>
    %36 = vector.shape_cast %35 : vector<8xf32> to vector<8x1xf32>
    %37 = vector.broadcast %36 : vector<8x1xf32> to vector<8x128xf32>
    %38 = arith.subf %34, %37 : vector<8x128xf32>
    %39 = math.exp %38 : vector<8x128xf32>
    %cst_16 = arith.constant dense<0.000000e+00> : vector<8xf32>
    %40 = vector.multi_reduction <add>, %39, %cst_16 [1] : vector<8x128xf32> to vector<8xf32>
    %41 = vector.shape_cast %40 : vector<8xf32> to vector<8x1xf32>
    %42 = math.log %41 : vector<8x1xf32>
    %43 = vector.broadcast %42 : vector<8x1xf32> to vector<8x128xf32>
    %44 = arith.subf %38, %43 : vector<8x128xf32>
    %c0_17 = arith.constant 0 : index
    %c0_18 = arith.constant 0 : index
    %45 = vector.load %arg7[%c0_17, %c0_18] : memref<8x128xf32, #tpu.memory_space<vmem>>, vector<8x128xf32>
    tpu.vector_store %arg7[%c0_17, %c0_18], %44 {strides = array<i32>} : memref<8x128xf32, #tpu.memory_space<vmem>>, vector<8x128xf32>,
    return
  }
  func.func @transform_0(%arg0: i32) -> (i32, i32) {
    %c0_i32 = arith.constant 0 : i32
    %c0_i32_0 = arith.constant 0 : i32
    return %arg0, %c0_i32 : i32, i32
  }
  func.func @transform_1(%arg0: i32) -> (i32, i32) {
    %c0_i32 = arith.constant 0 : i32
    %c0_i32_0 = arith.constant 0 : i32
    %c0_i32_1 = arith.constant 0 : i32
    return %c0_i32, %c0_i32_0 : i32, i32
  }
  func.func @transform_2(%arg0: i32) -> (i32, i32) {
    %c0_i32 = arith.constant 0 : i32
    %c0_i32_0 = arith.constant 0 : i32
    %c0_i32_1 = arith.constant 0 : i32
    return %c0_i32, %c0_i32_0 : i32, i32
  }
  func.func @transform_3(%arg0: i32) -> (i32, i32) {
    %c0_i32 = arith.constant 0 : i32
    %c0_i32_0 = arith.constant 0 : i32
    %c0_i32_1 = arith.constant 0 : i32
    return %c0_i32, %c0_i32_0 : i32, i32
  }
  func.func @transform_4(%arg0: i32) -> (i32, i32) {
    %c0_i32 = arith.constant 0 : i32
    %c0_i32_0 = arith.constant 0 : i32
    %c0_i32_1 = arith.constant 0 : i32
    return %c0_i32, %c0_i32_0 : i32, i32
  }
  func.func @transform_5(%arg0: i32) -> (i32, i32) {
    %c0_i32 = arith.constant 0 : i32
    %c0_i32_0 = arith.constant 0 : i32
    %c0_i32_1 = arith.constant 0 : i32
    return %c0_i32, %c0_i32_0 : i32, i32
  }
  func.func @transform_6(%arg0: i32) -> (i32, i32) {
    %c0_i32 = arith.constant 0 : i32
    %c0_i32_0 = arith.constant 0 : i32
    return %arg0, %c0_i32 : i32, i32
  }
}

</mosaic_0001>

<llo_original>
// kernel: lstm_tagger_forward.1
$region0: #{lstm_tagger_forward.1}
  #allocation0 [shape = 'u32[]', space=smem, size = 0x4, offset = 0x4, fixed_abs, tag = 'smem constant byte address 0x4 - core index']
  #allocation1 [shape = 'u32[72,128]{1,0:T(1,128)}', space=vmem, size = 0x9000, scoped, tag = 'internal scratch']
  %s0 = inlined_call_operand.vmem [shape: s32[8,1], index: 0, kind: input, shape index: {}]
  %s1 = inlined_call_operand.hbm [shape: f32[128,128], index: 1, kind: input, shape index: {}]
  %s2 = inlined_call_operand.hbm [shape: f32[128,128], index: 2, kind: input, shape index: {}]
  %s3 = inlined_call_operand.vmem [shape: f32[1,128], index: 3, kind: input, shape index: {}]
  %s4 = inlined_call_operand.hbm [shape: f32[32,128], index: 4, kind: input, shape index: {}]
  %s5 = inlined_call_operand.vmem [shape: f32[1,128], index: 5, kind: input, shape index: {}]
  %s6 = inlined_call_operand.hbm [shape: f32[8,128], index: 6, kind: output, shape index: {}]
  %s7 = sld [smem:[#allocation0]]
  $region46: #{lstm_tagger_forward.1} parent=0
    _
  %s9 = ssub.s32 1, %s7
  %s10 = scalar_select 0, %s9, %s7
  $region1: #{lstm_tagger_forward.1} parent=0
    #allocation2 [shape = 'u8[65536]{0}', space=vmem, size = 0x10000, scoped, tag = 'input window, operand 1, single buffered']
    #allocation3 [shape = 's32[1]{0}', space=sflag, size = 0x4, scoped, tag = 'scoped memory for lstm_tagger_forward.1']
    #allocation4 [shape = 's32[1]{0}', space=sflag, size = 0x4, scoped, tag = 'scoped memory for lstm_tagger_forward.1']
    #allocation5 [shape = 'u8[65536]{0}', space=vmem, size = 0x10000, scoped, tag = 'input window, operand 2, single buffered']
    #allocation6 [shape = 's32[1]{0}', space=sflag, size = 0x4, scoped, tag = 'scoped memory for lstm_tagger_forward.1']
    #allocation7 [shape = 'u8[16384]{0}', space=vmem, size = 0x4000, scoped, tag = 'input window, operand 4, single buffered']
    #allocation8 [shape = 'u8[4096]{0}', space=vmem, size = 0x1000, scoped, tag = 'output window, operand 0, single buffered']
    %11 = vsyncpa [#allocation3], 0
    %12 = vsyncpa [#allocation6], 0
    %13 = vsyncpa [#allocation4], 0
    // Predicated region
    $region2: #{lstm_tagger_forward.1} parent=1 // pred_check
      _
    $region3: #{lstm_tagger_forward.1} parent=1 // pred_check_branch
      %15 = sbr.rel (0) target = $region5
    $region4: #{lstm_tagger_forward.1} parent=1 // pred_region
      _
    $region5: #{lstm_tagger_forward.1} parent=1 // pred_fallthru
      _
    // Predicated region
    $region6: #{lstm_tagger_forward.1} parent=1 // pred_check
      _
    $region7: #{lstm_tagger_forward.1} parent=1 // pred_check_branch
      %17 = sbr.rel (0) target = $region9
    $region8: #{lstm_tagger_forward.1} parent=1 // pred_region
      %19 = vsyncadd [#allocation3], 0
      %s20 = sshll.u32 %s1, 4
      %s21 = int_to_ptr.hbm [resolvable:$true] %s20
      %s22 = sshll.u32 [#allocation2], 4
      %s23 = int_to_ptr.vmem [resolvable:$true] %s22
      %28 = dma.hbm_to_vmem [thread:$0]  %s21, 2048, %s23, [#allocation3], 128, 128, 8
    $region9: #{lstm_tagger_forward.1} parent=1 // pred_fallthru
      _
    // Predicated region
    $region10: #{lstm_tagger_forward.1} parent=1 // pred_check
      _
    $region11: #{lstm_tagger_forward.1} parent=1 // pred_check_branch
      %30 = sbr.rel (0) target = $region13
    $region12: #{lstm_tagger_forward.1} parent=1 // pred_region
      %32 = vsyncadd [#allocation6], 0
      %s33 = sshll.u32 %s2, 4
      %s34 = int_to_ptr.hbm [resolvable:$true] %s33
      %s35 = sshll.u32 [#allocation5], 4
      %s36 = int_to_ptr.vmem [resolvable:$true] %s35
      %41 = dma.hbm_to_vmem [thread:$0]  %s34, 2048, %s36, [#allocation6], 128, 128, 8
    $region13: #{lstm_tagger_forward.1} parent=1 // pred_fallthru
      _
    // Predicated region
    $region14: #{lstm_tagger_forward.1} parent=1 // pred_check
      _
    $region15: #{lstm_tagger_forward.1} parent=1 // pred_check_branch
      %43 = sbr.rel (0) target = $region17
    $region16: #{lstm_tagger_forward.1} parent=1 // pred_region
      _
    $region17: #{lstm_tagger_forward.1} parent=1 // pred_fallthru
      _
    // Predicated region
    $region18: #{lstm_tagger_forward.1} parent=1 // pred_check
      _
    $region19: #{lstm_tagger_forward.1} parent=1 // pred_check_branch
      %45 = sbr.rel (0) target = $region21
    $region20: #{lstm_tagger_forward.1} parent=1 // pred_region
      %47 = vsyncadd [#allocation6], 0
      %s48 = sshll.u32 %s4, 4
      %s49 = int_to_ptr.hbm [resolvable:$true] %s48
      %s50 = sshll.u32 [#allocation7], 4
      %s51 = int_to_ptr.vmem [resolvable:$true] %s50
      %56 = dma.hbm_to_vmem [thread:$0]  %s49, 512, %s51, [#allocation6], 128, 128, 8
    $region21: #{lstm_tagger_forward.1} parent=1 // pred_fallthru
      _
    // Predicated region
    $region22: #{lstm_tagger_forward.1} parent=1 // pred_check
      _
    $region23: #{lstm_tagger_forward.1} parent=1 // pred_check_branch
      %58 = sbr.rel (0) target = $region25
    $region24: #{lstm_tagger_forward.1} parent=1 // pred_region
      _
    $region25: #{lstm_tagger_forward.1} parent=1 // pred_fallthru
      _
    // Predicated region
    $region26: #{lstm_tagger_forward.1} parent=1 // pred_check
      _
    $region27: #{lstm_tagger_forward.1} parent=1 // pred_check_branch
      %60 = sbr.rel (0) target = $region29
    $region28: #{lstm_tagger_forward.1} parent=1 // pred_region
      %62 = dma.done [#allocation3], 2048
    $region29: #{lstm_tagger_forward.1} parent=1 // pred_fallthru
      _
    // Predicated region
    $region30: #{lstm_tagger_forward.1} parent=1 // pred_check
      _
    $region31: #{lstm_tagger_forward.1} parent=1 // pred_check_branch
      %64 = sbr.rel (0) target = $region33
    $region32: #{lstm_tagger_forward.1} parent=1 // pred_region
      %66 = dma.done [#allocation6], 2048
    $region33: #{lstm_tagger_forward.1} parent=1 // pred_fallthru
      _
    // Predicated region
    $region34: #{lstm_tagger_forward.1} parent=1 // pred_check
      _
    $region35: #{lstm_tagger_forward.1} parent=1 // pred_check_branch
      %68 = sbr.rel (0) target = $region37
    $region36: #{lstm_tagger_forward.1} parent=1 // pred_region
      %70 = dma.done [#allocation6], 512
    $region37: #{lstm_tagger_forward.1} parent=1 // pred_fallthru
      _
    %v71 = vlaneseq
    %v72 = vand.u32 %v71, 127
    %v73 = vld [vmem:[%s0] sm:$0xff]
    %74 = vset.pattern.permute.xlu0 0
    %75 = vperm.xlu0 %74, %v73
    %v76 = vpop.permute.xlu0 %75
    %vm77 = vcmp.eq.s32.totalorder %v76, %v72
    %v78 = vsel %vm77, 1, 0
    %v79 = vcvt.s32.f32 %v78
    %v80 = vld [vmem:[#allocation2] sm:$0xff]
    %v81 = vld [vmem:[#allocation2 + $0x8] sm:$0xff]
    %v82 = vld [vmem:[#allocation2 + $0x10] sm:$0xff]
    %v83 = vld [vmem:[#allocation2 + $0x18] sm:$0xff]
    %v84 = vld [vmem:[#allocation2 + $0x20] sm:$0xff]
    %v85 = vld [vmem:[#allocation2 + $0x28] sm:$0xff]
    %v86 = vld [vmem:[#allocation2 + $0x30] sm:$0xff]
    %v87 = vld [vmem:[#allocation2 + $0x38] sm:$0xff]
    %v88 = vld [vmem:[#allocation2 + $0x40] sm:$0xff]
    %v89 = vld [vmem:[#allocation2 + $0x48] sm:$0xff]
    %v90 = vld [vmem:[#allocation2 + $0x50] sm:$0xff]
    %v91 = vld [vmem:[#allocation2 + $0x58] sm:$0xff]
    %v92 = vld [vmem:[#allocation2 + $0x60] sm:$0xff]
    %v93 = vld [vmem:[#allocation2 + $0x68] sm:$0xff]
    %v94 = vld [vmem:[#allocation2 + $0x70] sm:$0xff]
    %v95 = vld [vmem:[#allocation2 + $0x78] sm:$0xff]
    %96 = vmatpush.msra.mxu0 %v95
    %97 = vmatpush.msra.mxu0 %v94
    %98 = vmatpush.msra.mxu0 %v93
    %99 = vmatpush.msra.mxu0 %v92
    %100 = vmatpush.msra.mxu0 %v91
    %101 = vmatpush.msra.mxu0 %v90
    %102 = vmatpush.msra.mxu0 %v89
    %103 = vmatpush.msra.mxu0 %v88
    %104 = vmatpush.msra.mxu0 %v87
    %105 = vmatpush.msra.mxu0 %v86
    %106 = vmatpush.msra.mxu0 %v85
    %107 = vmatpush.msra.mxu0 %v84
    %108 = vmatpush.msra.mxu0 %v83
    %109 = vmatpush.msra.mxu0 %v82
    %110 = vmatpush.msra.mxu0 %v81
    %111 = vmatpush.msra.mxu0 %v80
    %112 = vmatmul.f32.gmra.mxu0 %v79
    %v113 = vpop.f32.mrf.mxu0
    %v114 = vadd.f32 0.0, %v113
    %115 = vdwg.mxu0
    %v116 = vld [vmem:[#allocation5] sm:$0xff]
    %v117 = vld [vmem:[#allocation5 + $0x8] sm:$0xff]
    %v118 = vld [vmem:[#allocation5 + $0x10] sm:$0xff]
    %v119 = vld [vmem:[#allocation5 + $0x18] sm:$0xff]
    %v120 = vld [vmem:[#allocation5 + $0x20] sm:$0xff]
    %v121 = vld [vmem:[#allocation5 + $0x28] sm:$0xff]
    %v122 = vld [vmem:[#allocation5 + $0x30] sm:$0xff]
    %v123 = vld [vmem:[#allocation5 + $0x38] sm:$0xff]
    %v124 = vld [vmem:[#allocation5 + $0x40] sm:$0xff]
    %v125 = vld [vmem:[#allocation5 + $0x48] sm:$0xff]
    %v126 = vld [vmem:[#allocation5 + $0x50] sm:$0xff]
    %v127 = vld [vmem:[#allocation5 + $0x58] sm:$0xff]
    %v128 = vld [vmem:[#allocation5 + $0x60] sm:$0xff]
    %v129 = vld [vmem:[#allocation5 + $0x68] sm:$0xff]
    %v130 = vld [vmem:[#allocation5 + $0x70] sm:$0xff]
    %v131 = vld [vmem:[#allocation5 + $0x78] sm:$0xff]
    %v132 = vld [vmem:[%s3] sm:$0x1]
    %v134 = vperm.slane %v132, 0
    %136 = vmatpush.msra.mxu0 %v131
    %137 = vmatpush.msra.mxu0 %v130
    %138 = vmatpush.msra.mxu0 %v129
    %139 = vmatpush.msra.mxu0 %v128
    %140 = vmatpush.msra.mxu0 %v127
    %141 = vmatpush.msra.mxu0 %v126
    %142 = vmatpush.msra.mxu0 %v125
    %143 = vmatpush.msra.mxu0 %v124
    %144 = vmatpush.msra.mxu0 %v123
    %145 = vmatpush.msra.mxu0 %v122
    %146 = vmatpush.msra.mxu0 %v121
    %147 = vmatpush.msra.mxu0 %v120
    %148 = vmatpush.msra.mxu0 %v119
    %149 = vmatpush.msra.mxu0 %v118
    %150 = vmatpush.msra.mxu0 %v117
    %151 = vmatpush.msra.mxu0 %v116
    %152 = vmatmul.f32.gmra.mxu0 %v114
    %v153 = vpop.f32.mrf.mxu0
    %v154 = vadd.f32 %v134, %v153
    %155 = vdwg.mxu0
    %v156 = vxor.u32 %v154, 2147483648
    %v157 = vmul.f32 %v156, 1.442695
    %v158 = vpow.pop %v157
    %v159 = vadd.f32 %v158, 1.0
    %v160 = vrcp.pop %v159
    %v161 = vmul.f32 %v159, %v160
    %v162 = vsub.f32 1.0, %v161
    %v163 = vmul.f32 %v160, %v162
    %v164 = vadd.f32 %v160, %v163
    %vm165 = vweird.f32 %v159
    %vm166 = vweird.f32 %v160
    %vm167 = vmor %vm165, %vm166
    %v168 = vsel %vm167, %v160, %v164
    %v169 = vand.u32 2147483647, %v159
    %vm170 = vcmp.eq.f32.partialorder %v169, 8.507059e+37
    %v171 = vand.u32 %v159, 2147483648
    %v172 = vor.u32 1.1754944e-38, %v171
    %v173 = vsel %vm170, %v172, %v168
    %v174 = vmul.f32 1.0, %v173
    %v175 = vtanh.pop %v154
    %177 = vrot.lane.b32.xlu0 %v175, 96
    %v178 = vpop.permute.xlu0 %177
    %v180 = vmul.f32 %v174, %v178
    %v181 = vtanh.pop %v180
    %183 = vrot.lane.b32.xlu0 %v181, 64
    %v184 = vpop.permute.xlu0 %183
    %v186 = vmul.f32 %v174, %v184
    %v187 = vld [vmem:[#allocation7] sm:$0xff]
    %v188 = vld [vmem:[#allocation7 + $0x8] sm:$0xff]
    %v189 = vld [vmem:[#allocation7 + $0x10] sm:$0xff]
    %v190 = vld [vmem:[#allocation7 + $0x18] sm:$0xff]
    %v191 = vld [vmem:[%s5] sm:$0x1]
    %v193 = vperm.slane %v191, 0
    %196 = vrot.lane.b32.xlu0 %v186, 64
    %v197 = vpop.permute.xlu0 %196
    %vm198 = vcmask 261120
    %v199 = vsel %vm198, %v197, 0
    %201 = vmatpush.msra.mxu0 0.0
    %202 = vmatpush.msra.mxu0 0.0
    %203 = vmatpush.msra.mxu0 0.0
    %204 = vmatpush.msra.mxu0 0.0
    %205 = vmatpush.msra.mxu0 0.0
    %206 = vmatpush.msra.mxu0 0.0
    %207 = vmatpush.msra.mxu0 0.0
    %208 = vmatpush.msra.mxu0 0.0
    %209 = vmatpush.msra.mxu0 0.0
    %210 = vmatpush.msra.mxu0 0.0
    %211 = vmatpush.msra.mxu0 0.0
    %212 = vmatpush.msra.mxu0 0.0
    %213 = vmatpush.msra.mxu0 %v190
    %214 = vmatpush.msra.mxu0 %v189
    %215 = vmatpush.msra.mxu0 %v188
    %216 = vmatpush.msra.mxu0 %v187
    %217 = vmatmul.f32.gmra.mxu0 %v199
    %v218 = vpop.f32.mrf.mxu0
    %v219 = vadd.f32 %v193, %v218
    %220 = vdwg.mxu0
    %221 = vmax.xlane.f32.xlu0 %v219
    %v222 = vpop.xlane.xlu0 %221
    %v223 = vsub.f32 %v219, %v222
    %v224 = vmul.f32 %v223, 1.442695
    %v225 = vpow.pop %v224
    %226 = vadd.xlane.f32.xlu0 %v225
    %v227 = vpop.xlane.xlu0 %226
    %v228 = vlog2.pop %v227
    %v229 = vmul.f32 %v228, 0.6931472
    %v230 = vsub.f32 %v223, %v229
    %231 = vst [vmem:[#allocation8] sm:$0xff] %v230
    // Predicated region
    $region38: #{lstm_tagger_forward.1} parent=1 // pred_check
      _
    $region39: #{lstm_tagger_forward.1} parent=1 // pred_check_branch
      %233 = sbr.rel (0) target = $region41
    $region40: #{lstm_tagger_forward.1} parent=1 // pred_region
      %235 = vsyncadd [#allocation4], 0
      %s237 = sshll.u32 [#allocation8], 4
      %s238 = int_to_ptr.vmem [resolvable:$true] %s237
      %s239 = sshll.u32 %s6, 4
      %s240 = int_to_ptr.hbm [resolvable:$true] %s239
      %242 = dma.vmem_to_hbm [thread:$0]  %s238, 128, %s240, [#allocation4]
    $region41: #{lstm_tagger_forward.1} parent=1 // pred_fallthru
      _
    // Predicated region
    $region42: #{lstm_tagger_forward.1} parent=1 // pred_check
      _
    $region43: #{lstm_tagger_forward.1} parent=1 // pred_check_branch
      %244 = sbr.rel (0) target = $region45
    $region44: #{lstm_tagger_forward.1} parent=1 // pred_region
      %246 = dma.done [#allocation4], 128
    $region45: #{lstm_tagger_forward.1} parent=1 // pred_fallthru
      _
    %247 = vsyncpa [#allocation3], 1
    %248 = vsyncpa [#allocation6], 1
    %249 = vsyncpa [#allocation4], 1

</llo_original>
